<compile_context>
chip_gen: v6e
topology: v6e:2x2x1
jax: 0.10.0
libtpu: 0.0.40
codegen_flags: <defaults>
</compile_context>

<pallas_src>
import functools

import jax
import jax.numpy as jnp
from jax.experimental import pallas as pl
from jax.experimental.pallas import tpu as pltpu

BN_EPS = 1e-5
PAD_F = 128                    # lane-padded width of every hidden/output layer
MATMUL_DTYPE = jnp.bfloat16    # MXU fast path; set to jnp.float32 for full-f32 parity


def _round_up(n, m):
    return (n + m - 1) // m * m


def _mlp_kernel(x_ref, w_ref, vec_ref, o_ref, *, p_in, n_classes):
    """Whole forward pass of D in one kernel (everything VMEM-resident).

    x_ref   : (B, p_in)          f32, (zero-padded) flattened input
    w_ref   : (p_in + 256, 128)  bf16, rows [0:p_in]=W0, [p_in:p_in+128]=W1,
                                 [p_in+128:p_in+256]=W2 (zero-padded, layout (in, out))
    vec_ref : (6, 128)           f32, rows per layer i: 2i=gamma, 2i+1=beta
    o_ref   : (B, 128)           f32, lane-dense log_softmax slab (valid cols [:n_classes])
    """
    compute_dtype = w_ref.dtype

    def layer(h, w_lo, w_hi, v_row):
        w = w_ref[w_lo:w_hi, :]                                  # static slice of the slab
        y = jnp.dot(h.astype(compute_dtype), w,                  # bf16 x bf16 -> f32 acc
                    preferred_element_type=jnp.float32)
        # Training-mode BatchNorm1d. The Linear bias is intentionally omitted: a
        # per-column constant is exactly cancelled by the batch-mean subtraction
        # and does not change the batch variance.
        mu = jnp.mean(y, axis=0, keepdims=True)
        var = jnp.maximum(jnp.mean(y * y, axis=0, keepdims=True) - mu * mu, 0.0)
        scale = vec_ref[v_row:v_row + 1, :] * jax.lax.rsqrt(var + BN_EPS)   # gamma / std
        shift = vec_ref[v_row + 1:v_row + 2, :] - mu * scale                # beta - mu*scale
        return jnp.maximum(y * scale + shift, 0.0)               # folded BN affine + ReLU
        # Padded lanes: W cols / gamma / beta are zero -> y, scale, shift all zero there.

    h = x_ref[...]                                               # f32 activations
    h = layer(h, 0, p_in, 0)                                     # image_size -> 100 (padded 128)
    h = layer(h, p_in, p_in + PAD_F, 2)                          # 100 -> 50  (padded 128)
    h = layer(h, p_in + PAD_F, p_in + 2 * PAD_F, 4)              # 50  -> 10  (padded 128)

    # log_softmax over the valid classes only: mask padded lanes with a large
    # negative (plain Python literal, NOT a captured array) before the reductions.
    lane = jax.lax.broadcasted_iota(jnp.int32, h.shape, dimension=1)
    z = jnp.where(lane < n_classes, h, -1e30)
    z = z - jnp.max(z, axis=1, keepdims=True)
    lse = jnp.log(jnp.sum(jnp.exp(z), axis=1, keepdims=True))
    o_ref[...] = (z - lse).astype(o_ref.dtype)


def pack_params(params):
    """Pack the 9 used parameter tensors (biases dropped — see kernel comment) into
    one bf16 weight slab and one f32 (gamma, beta) slab. Call ONCE per parameter set
    and reuse across forward calls."""
    image_size = params["w0"].shape[0]
    n_classes = params["w2"].shape[1]
    p_in = _round_up(image_size, PAD_F)

    w0 = jnp.pad(params["w0"], ((0, p_in - image_size), (0, PAD_F - params["w0"].shape[1])))
    w1 = jnp.pad(params["w1"], ((0, PAD_F - params["w1"].shape[0]), (0, PAD_F - params["w1"].shape[1])))
    w2 = jnp.pad(params["w2"], ((0, PAD_F - params["w2"].shape[0]), (0, PAD_F - params["w2"].shape[1])))
    w_slab = jnp.concatenate([w0, w1, w2], axis=0).astype(MATMUL_DTYPE)

    def _vec(name, i):
        v = params[f"{name}{i}"].reshape(1, -1)
        return jnp.pad(v, ((0, 0), (0, PAD_F - v.shape[1])))

    vec_slab = jnp.concatenate(
        [_vec(n, i) for i in range(3) for n in ("g", "be")], axis=0
    ).astype(jnp.float32)
    return w_slab, vec_slab, image_size, n_classes


def d_forward(x, w_slab, vec_slab, image_size, n_classes):
    """x: any shape whose trailing dims flatten to image_size (NCHW input ok)."""
    p_in = w_slab.shape[0] - 2 * PAD_F
    x2d = x.reshape(-1, image_size)
    if x2d.dtype != jnp.float32:
        x2d = x2d.astype(jnp.float32)
    if p_in != image_size:                       # only pad K when image_size % 128 != 0
        x2d = jnp.pad(x2d, ((0, 0), (0, p_in - image_size)))
    batch = x2d.shape[0]

    # ---- compiler hints: generation-aware VMEM budget + cost estimate ----
    resident_bytes = (x2d.size * x2d.dtype.itemsize
                      + w_slab.size * w_slab.dtype.itemsize
                      + vec_slab.size * vec_slab.dtype.itemsize
                      + batch * PAD_F * 4)
    try:
        vmem_cap = int(pltpu.get_tpu_info().vmem_capacity_bytes)
    except Exception:
        vmem_cap = 64 * 2**20                    # conservative fallback (v7x-sized)
    vmem_limit = int(min(int(0.4 * vmem_cap), max(8 * 2**20, 4 * resident_bytes)))

    flops = 2 * batch * (p_in * PAD_F + 2 * PAD_F * PAD_F) + 24 * batch * PAD_F
    cost = pl.CostEstimate(
        flops=int(flops),
        transcendentals=int(batch * PAD_F + batch + 3 * PAD_F),
        bytes_accessed=int(resident_bytes),
    )

    vmem = pl.BlockSpec(memory_space=pltpu.MemorySpace.VMEM)
    out = pl.pallas_call(
        functools.partial(_mlp_kernel, p_in=p_in, n_classes=n_classes),
        out_shape=jax.ShapeDtypeStruct((batch, PAD_F), jnp.float32),
        in_specs=[vmem, vmem, vmem],
        out_specs=vmem,
        compiler_params=pltpu.CompilerParams(vmem_limit_bytes=vmem_limit),
        cost_estimate=cost,
    )(x2d, w_slab, vec_slab)

    return out[:, :n_classes]


def init_params(key, image_size):
    """Deterministic init mimicking nn.Linear defaults (U(-1/sqrt(in), 1/sqrt(in)))
    and BatchNorm1d defaults (gamma=1, beta=0). Weights stored as (in, out)."""
    dims = [(image_size, 100), (100, 50), (50, 10)]
    params = {}
    for i, (fan_in, fan_out) in enumerate(dims):
        key, kw, kb = jax.random.split(key, 3)
        bound = 1.0 / (fan_in ** 0.5)
        params[f"w{i}"] = jax.random.uniform(
            kw, (fan_in, fan_out), jnp.float32, -bound, bound)
        params[f"b{i}"] = jax.random.uniform(
            kb, (1, fan_out), jnp.float32, -bound, bound)
        params[f"g{i}"] = jnp.ones((1, fan_out), jnp.float32)
        params[f"be{i}"] = jnp.zeros((1, fan_out), jnp.float32)
    return params


def d_forward_ref(x, params, matmul_dtype=jnp.float32):
    """Pure-JAX reference of the PyTorch train-mode forward (bias INCLUDED, so it
    also validates the bias-cancellation identity); `matmul_dtype` mirrors the
    kernel's bf16 MXU operand precision."""
    h = x.reshape(-1, params["w0"].shape[0]).astype(jnp.float32)
    for i in range(3):
        y = jnp.dot(h.astype(matmul_dtype), params[f"w{i}"].astype(matmul_dtype),
                    preferred_element_type=jnp.float32) + params[f"b{i}"]
        mu = jnp.mean(y, axis=0, keepdims=True)
        var = jnp.mean((y - mu) ** 2, axis=0, keepdims=True)
        y = (y - mu) / jnp.sqrt(var + BN_EPS)
        y = y * params[f"g{i}"] + params[f"be{i}"]
        h = jnp.maximum(y, 0.0)
    return jax.nn.log_softmax(h, axis=1)


if __name__ == "__main__":
    key = jax.random.PRNGKey(0)
    k_x, k_p = jax.random.split(key)

    # Small NCHW-style input: batch=8, channels=1, 16x16 -> image_size = 256.
    image_size = 1 * 16 * 16
    x = jax.random.normal(k_x, (8, 1, 16, 16), jnp.float32)
    params = init_params(k_p, image_size)

    # Parameter packing is hoisted out of the forward (done once, reused per call).
    w_slab, vec_slab, image_size, n_classes = pack_params(params)

    out = jax.block_until_ready(d_forward(x, w_slab, vec_slab, image_size, n_classes))

    ref = d_forward_ref(x, params, matmul_dtype=MATMUL_DTYPE)
    assert out.shape == (8, 10)
    assert jnp.allclose(out, ref, atol=3e-3, rtol=3e-3), "mismatch vs reference"

    print("KERNEL_OK")
</pallas_src>

<mosaic_0001>
module attributes {stable_mosaic.version = 11 : i64} {
  func.func @_mlp_kernel(%arg0: memref<8x256xf32, #tpu.memory_space<vmem>>, %arg1: memref<512x128xbf16, #tpu.memory_space<vmem>>, %arg2: memref<6x128xf32, #tpu.memory_space<vmem>>, %arg3: memref<8x128xf32, #tpu.memory_space<vmem>>) attributes {dimension_semantics = [], scalar_prefetch = 0 : i64, scratch_operands = 0 : i64, tpu.core_type = #tpu.core_type<tc>} {
    %c0 = arith.constant 0 : index
    %c0_0 = arith.constant 0 : index
    %0 = vector.load %arg0[%c0, %c0_0] : memref<8x256xf32, #tpu.memory_space<vmem>>, vector<8x256xf32>
    %c0_1 = arith.constant 0 : index
    %c0_2 = arith.constant 0 : index
    %1 = vector.load %arg1[%c0_1, %c0_2] : memref<512x128xbf16, #tpu.memory_space<vmem>>, vector<256x128xbf16>
    %2 = arith.truncf %0 : vector<8x256xf32> to vector<8x256xbf16>
    %cst = arith.constant dense<0.000000e+00> : vector<8x128xf32>
    %3 = tpu.matmul %2, %1, %cst {dimension_numbers = #tpu.dot_dimension_numbers<[1], [0], [0], [1], [0, 0, 1, 1], [], []>} : vector<8x256xbf16>, vector<256x128xbf16>, vector<8x128xf32> -> vector<8x128xf32>
    %cst_3 = arith.constant dense<0.000000e+00> : vector<128xf32>
    %4 = vector.multi_reduction <add>, %3, %cst_3 [0] : vector<8x128xf32> to vector<128xf32>
    %5 = vector.shape_cast %4 : vector<128xf32> to vector<1x128xf32>
    %cst_4 = arith.constant 8.000000e+00 : f32
    %6 = vector.broadcast %cst_4 : f32 to vector<1x128xf32>
    %7 = arith.divf %5, %6 : vector<1x128xf32>
    %8 = arith.mulf %3, %3 : vector<8x128xf32>
    %cst_5 = arith.constant dense<0.000000e+00> : vector<128xf32>
    %9 = vector.multi_reduction <add>, %8, %cst_5 [0] : vector<8x128xf32> to vector<128xf32>
    %10 = vector.shape_cast %9 : vector<128xf32> to vector<1x128xf32>
    %cst_6 = arith.constant 8.000000e+00 : f32
    %11 = vector.broadcast %cst_6 : f32 to vector<1x128xf32>
    %12 = arith.divf %10, %11 : vector<1x128xf32>
    %13 = arith.mulf %7, %7 : vector<1x128xf32>
    %14 = arith.subf %12, %13 : vector<1x128xf32>
    %cst_7 = arith.constant 0.000000e+00 : f32
    %15 = vector.broadcast %cst_7 : f32 to vector<1x128xf32>
    %16 = arith.maximumf %14, %15 : vector<1x128xf32>
    %c0_8 = arith.constant 0 : index
    %c0_9 = arith.constant 0 : index
    %17 = vector.load %arg2[%c0_8, %c0_9] : memref<6x128xf32, #tpu.memory_space<vmem>>, vector<1x128xf32>
    %cst_10 = arith.constant 9.99999974E-6 : f32
    %18 = vector.broadcast %cst_10 : f32 to vector<1x128xf32>
    %19 = arith.addf %16, %18 : vector<1x128xf32>
    %20 = math.rsqrt %19 : vector<1x128xf32>
    %21 = arith.mulf %17, %20 : vector<1x128xf32>
    %c1 = arith.constant 1 : index
    %c0_11 = arith.constant 0 : index
    %22 = vector.load %arg2[%c1, %c0_11] : memref<6x128xf32, #tpu.memory_space<vmem>>, vector<1x128xf32>
    %23 = arith.mulf %7, %21 : vector<1x128xf32>
    %24 = arith.subf %22, %23 : vector<1x128xf32>
    %25 = vector.broadcast %21 : vector<1x128xf32> to vector<8x128xf32>
    %26 = arith.mulf %3, %25 : vector<8x128xf32>
    %27 = vector.broadcast %24 : vector<1x128xf32> to vector<8x128xf32>
    %28 = arith.addf %26, %27 : vector<8x128xf32>
    %cst_12 = arith.constant 0.000000e+00 : f32
    %29 = vector.broadcast %cst_12 : f32 to vector<8x128xf32>
    %30 = arith.maximumf %28, %29 : vector<8x128xf32>
    %c256 = arith.constant 256 : index
    %c0_13 = arith.constant 0 : index
    %31 = vector.load %arg1[%c256, %c0_13] : memref<512x128xbf16, #tpu.memory_space<vmem>>, vector<128x128xbf16>
    %32 = arith.truncf %30 : vector<8x128xf32> to vector<8x128xbf16>
    %cst_14 = arith.constant dense<0.000000e+00> : vector<8x128xf32>
    %33 = tpu.matmul %32, %31, %cst_14 {dimension_numbers = #tpu.dot_dimension_numbers<[1], [0], [0], [1], [0, 0, 1, 1], [], []>} : vector<8x128xbf16>, vector<128x128xbf16>, vector<8x128xf32> -> vector<8x128xf32>
    %cst_15 = arith.constant dense<0.000000e+00> : vector<128xf32>
    %34 = vector.multi_reduction <add>, %33, %cst_15 [0] : vector<8x128xf32> to vector<128xf32>
    %35 = vector.shape_cast %34 : vector<128xf32> to vector<1x128xf32>
    %cst_16 = arith.constant 8.000000e+00 : f32
    %36 = vector.broadcast %cst_16 : f32 to vector<1x128xf32>
    %37 = arith.divf %35, %36 : vector<1x128xf32>
    %38 = arith.mulf %33, %33 : vector<8x128xf32>
    %cst_17 = arith.constant dense<0.000000e+00> : vector<128xf32>
    %39 = vector.multi_reduction <add>, %38, %cst_17 [0] : vector<8x128xf32> to vector<128xf32>
    %40 = vector.shape_cast %39 : vector<128xf32> to vector<1x128xf32>
    %cst_18 = arith.constant 8.000000e+00 : f32
    %41 = vector.broadcast %cst_18 : f32 to vector<1x128xf32>
    %42 = arith.divf %40, %41 : vector<1x128xf32>
    %43 = arith.mulf %37, %37 : vector<1x128xf32>
    %44 = arith.subf %42, %43 : vector<1x128xf32>
    %cst_19 = arith.constant 0.000000e+00 : f32
    %45 = vector.broadcast %cst_19 : f32 to vector<1x128xf32>
    %46 = arith.maximumf %44, %45 : vector<1x128xf32>
    %c2 = arith.constant 2 : index
    %c0_20 = arith.constant 0 : index
    %47 = vector.load %arg2[%c2, %c0_20] : memref<6x128xf32, #tpu.memory_space<vmem>>, vector<1x128xf32>
    %cst_21 = arith.constant 9.99999974E-6 : f32
    %48 = vector.broadcast %cst_21 : f32 to vector<1x128xf32>
    %49 = arith.addf %46, %48 : vector<1x128xf32>
    %50 = math.rsqrt %49 : vector<1x128xf32>
    %51 = arith.mulf %47, %50 : vector<1x128xf32>
    %c3 = arith.constant 3 : index
    %c0_22 = arith.constant 0 : index
    %52 = vector.load %arg2[%c3, %c0_22] : memref<6x128xf32, #tpu.memory_space<vmem>>, vector<1x128xf32>
    %53 = arith.mulf %37, %51 : vector<1x128xf32>
    %54 = arith.subf %52, %53 : vector<1x128xf32>
    %55 = vector.broadcast %51 : vector<1x128xf32> to vector<8x128xf32>
    %56 = arith.mulf %33, %55 : vector<8x128xf32>
    %57 = vector.broadcast %54 : vector<1x128xf32> to vector<8x128xf32>
    %58 = arith.addf %56, %57 : vector<8x128xf32>
    %cst_23 = arith.constant 0.000000e+00 : f32
    %59 = vector.broadcast %cst_23 : f32 to vector<8x128xf32>
    %60 = arith.maximumf %58, %59 : vector<8x128xf32>
    %c384 = arith.constant 384 : index
    %c0_24 = arith.constant 0 : index
    %61 = vector.load %arg1[%c384, %c0_24] : memref<512x128xbf16, #tpu.memory_space<vmem>>, vector<128x128xbf16>
    %62 = arith.truncf %60 : vector<8x128xf32> to vector<8x128xbf16>
    %cst_25 = arith.constant dense<0.000000e+00> : vector<8x128xf32>
    %63 = tpu.matmul %62, %61, %cst_25 {dimension_numbers = #tpu.dot_dimension_numbers<[1], [0], [0], [1], [0, 0, 1, 1], [], []>} : vector<8x128xbf16>, vector<128x128xbf16>, vector<8x128xf32> -> vector<8x128xf32>
    %cst_26 = arith.constant dense<0.000000e+00> : vector<128xf32>
    %64 = vector.multi_reduction <add>, %63, %cst_26 [0] : vector<8x128xf32> to vector<128xf32>
    %65 = vector.shape_cast %64 : vector<128xf32> to vector<1x128xf32>
    %cst_27 = arith.constant 8.000000e+00 : f32
    %66 = vector.broadcast %cst_27 : f32 to vector<1x128xf32>
    %67 = arith.divf %65, %66 : vector<1x128xf32>
    %68 = arith.mulf %63, %63 : vector<8x128xf32>
    %cst_28 = arith.constant dense<0.000000e+00> : vector<128xf32>
    %69 = vector.multi_reduction <add>, %68, %cst_28 [0] : vector<8x128xf32> to vector<128xf32>
    %70 = vector.shape_cast %69 : vector<128xf32> to vector<1x128xf32>
    %cst_29 = arith.constant 8.000000e+00 : f32
    %71 = vector.broadcast %cst_29 : f32 to vector<1x128xf32>
    %72 = arith.divf %70, %71 : vector<1x128xf32>
    %73 = arith.mulf %67, %67 : vector<1x128xf32>
    %74 = arith.subf %72, %73 : vector<1x128xf32>
    %cst_30 = arith.constant 0.000000e+00 : f32
    %75 = vector.broadcast %cst_30 : f32 to vector<1x128xf32>
    %76 = arith.maximumf %74, %75 : vector<1x128xf32>
    %c4 = arith.constant 4 : index
    %c0_31 = arith.constant 0 : index
    %77 = vector.load %arg2[%c4, %c0_31] : memref<6x128xf32, #tpu.memory_space<vmem>>, vector<1x128xf32>
    %cst_32 = arith.constant 9.99999974E-6 : f32
    %78 = vector.broadcast %cst_32 : f32 to vector<1x128xf32>
    %79 = arith.addf %76, %78 : vector<1x128xf32>
    %80 = math.rsqrt %79 : vector<1x128xf32>
    %81 = arith.mulf %77, %80 : vector<1x128xf32>
    %c5 = arith.constant 5 : index
    %c0_33 = arith.constant 0 : index
    %82 = vector.load %arg2[%c5, %c0_33] : memref<6x128xf32, #tpu.memory_space<vmem>>, vector<1x128xf32>
    %83 = arith.mulf %67, %81 : vector<1x128xf32>
    %84 = arith.subf %82, %83 : vector<1x128xf32>
    %85 = vector.broadcast %81 : vector<1x128xf32> to vector<8x128xf32>
    %86 = arith.mulf %63, %85 : vector<8x128xf32>
    %87 = vector.broadcast %84 : vector<1x128xf32> to vector<8x128xf32>
    %88 = arith.addf %86, %87 : vector<8x128xf32>
    %cst_34 = arith.constant 0.000000e+00 : f32
    %89 = vector.broadcast %cst_34 : f32 to vector<8x128xf32>
    %90 = arith.maximumf %88, %89 : vector<8x128xf32>
    %91 = tpu.iota {dimensions = array<i32: 1>} : vector<8x128xi32>
    %c10_i32 = arith.constant 10 : i32
    %92 = vector.broadcast %c10_i32 : i32 to vector<8x128xi32>
    %93 = arith.cmpi slt, %91, %92 : vector<8x128xi32>
    %cst_35 = arith.constant -1.000000e+30 : f32
    %94 = vector.broadcast %cst_35 : f32 to vector<8x128xf32>
    %95 = arith.select %93, %90, %94 : vector<8x128xi1>, vector<8x128xf32>
    %cst_36 = arith.constant dense<0xFF800000> : vector<8xf32>
    %96 = vector.multi_reduction <maximumf>, %95, %cst_36 [1] : vector<8x128xf32> to vector<8xf32>
    %97 = vector.shape_cast %96 : vector<8xf32> to vector<8x1xf32>
    %98 = vector.broadcast %97 : vector<8x1xf32> to vector<8x128xf32>
    %99 = arith.subf %95, %98 : vector<8x128xf32>
    %100 = math.exp %99 : vector<8x128xf32>
    %cst_37 = arith.constant dense<0.000000e+00> : vector<8xf32>
    %101 = vector.multi_reduction <add>, %100, %cst_37 [1] : vector<8x128xf32> to vector<8xf32>
    %102 = vector.shape_cast %101 : vector<8xf32> to vector<8x1xf32>
    %103 = math.log %102 : vector<8x1xf32>
    %104 = vector.broadcast %103 : vector<8x1xf32> to vector<8x128xf32>
    %105 = arith.subf %99, %104 : vector<8x128xf32>
    %c0_38 = arith.constant 0 : index
    %c0_39 = arith.constant 0 : index
    %106 = vector.load %arg3[%c0_38, %c0_39] : memref<8x128xf32, #tpu.memory_space<vmem>>, vector<8x128xf32>
    tpu.vector_store %arg3[%c0_38, %c0_39], %105 {strides = array<i32>} : memref<8x128xf32, #tpu.memory_space<vmem>>, vector<8x128xf32>,
    return
  }
}

</mosaic_0001>

<llo_original>
// kernel: tpu_custom_call.1
$region0: #{tpu_custom_call.1}
  #allocation0 [shape = 'u32[]', space=smem, size = 0x4, offset = 0x4, fixed_abs, tag = 'smem constant byte address 0x4 - core index']
  #allocation1 [shape = 'u32[144,128]{1,0:T(1,128)}', space=vmem, size = 0x12000, scoped, tag = 'internal scratch']
  %s0 = inlined_call_operand.hbm [shape: f32[8,256], index: 0, kind: input, shape index: {}]
  %s1 = inlined_call_operand.hbm [shape: bf16[512,128], index: 1, kind: input, shape index: {}]
  %s2 = inlined_call_operand.hbm [shape: f32[6,128], index: 2, kind: input, shape index: {}]
  %s3 = inlined_call_operand.hbm [shape: f32[8,128], index: 3, kind: output, shape index: {}]
  %s4 = sld [smem:[#allocation0]]
  $region34: #{tpu_custom_call.1} parent=0
    _
  %s6 = ssub.s32 1, %s4
  %s7 = scalar_select 0, %s6, %s4
  $region1: #{tpu_custom_call.1} parent=0
    #allocation2 [shape = 'u8[8192]{0}', space=vmem, size = 0x2000, scoped, tag = 'input window, operand 0, single buffered']
    #allocation3 [shape = 's32[1]{0}', space=sflag, size = 0x4, scoped, tag = 'scoped memory for tpu_custom_call.1']
    #allocation4 [shape = 's32[1]{0}', space=sflag, size = 0x4, scoped, tag = 'scoped memory for tpu_custom_call.1']
    #allocation5 [shape = 'u8[131072]{0}', space=vmem, size = 0x20000, scoped, tag = 'input window, operand 1, single buffered']
    #allocation6 [shape = 's32[1]{0}', space=sflag, size = 0x4, scoped, tag = 'scoped memory for tpu_custom_call.1']
    #allocation7 [shape = 'u8[4096]{0}', space=vmem, size = 0x1000, scoped, tag = 'input window, operand 2, single buffered']
    #allocation8 [shape = 'u8[4096]{0}', space=vmem, size = 0x1000, scoped, tag = 'output window, operand 0, single buffered']
    %8 = vsyncpa [#allocation3], 0
    %9 = vsyncpa [#allocation6], 0
    %10 = vsyncpa [#allocation4], 0
    // Predicated region
    $region2: #{tpu_custom_call.1} parent=1 // pred_check
      _
    $region3: #{tpu_custom_call.1} parent=1 // pred_check_branch
      %12 = sbr.rel (0) target = $region5
    $region4: #{tpu_custom_call.1} parent=1 // pred_region
      %s14 = ssub.s32 256, 256
      %15 = vsyncadd [#allocation3], %s14
      %s17 = sshll.u32 [#allocation2], 4
      %s18 = int_to_ptr.vmem [resolvable:$true] %s17
      %20 = dma.hbm_to_vmem [thread:$0]  %s0, 256, %s18, [#allocation3]
    $region5: #{tpu_custom_call.1} parent=1 // pred_fallthru
      _
    // Predicated region
    $region6: #{tpu_custom_call.1} parent=1 // pred_check
      _
    $region7: #{tpu_custom_call.1} parent=1 // pred_check_branch
      %22 = sbr.rel (0) target = $region9
    $region8: #{tpu_custom_call.1} parent=1 // pred_region
      %s24 = ssub.s32 4096, 4096
      %25 = vsyncadd [#allocation6], %s24
      %s26 = sshll.u32 [#allocation5], 4
      %s27 = int_to_ptr.vmem [resolvable:$true] %s26
      %32 = dma.hbm_to_vmem [thread:$0]  %s1, 4096, %s27, [#allocation6], 64, 64, 4
    $region9: #{tpu_custom_call.1} parent=1 // pred_fallthru
      _
    // Predicated region
    $region10: #{tpu_custom_call.1} parent=1 // pred_check
      _
    $region11: #{tpu_custom_call.1} parent=1 // pred_check_branch
      %34 = sbr.rel (0) target = $region13
    $region12: #{tpu_custom_call.1} parent=1 // pred_region
      %s36 = ssub.s32 128, 128
      %37 = vsyncadd [#allocation6], %s36
      %s39 = sshll.u32 [#allocation7], 4
      %s40 = int_to_ptr.vmem [resolvable:$true] %s39
      %42 = dma.hbm_to_vmem [thread:$0]  %s2, 128, %s40, [#allocation6]
    $region13: #{tpu_custom_call.1} parent=1 // pred_fallthru
      _
    // Predicated region
    $region14: #{tpu_custom_call.1} parent=1 // pred_check
      _
    $region15: #{tpu_custom_call.1} parent=1 // pred_check_branch
      %44 = sbr.rel (0) target = $region17
    $region16: #{tpu_custom_call.1} parent=1 // pred_region
      %45 = dma.done [#allocation3], 256
    $region17: #{tpu_custom_call.1} parent=1 // pred_fallthru
      _
    // Predicated region
    $region18: #{tpu_custom_call.1} parent=1 // pred_check
      _
    $region19: #{tpu_custom_call.1} parent=1 // pred_check_branch
      %47 = sbr.rel (0) target = $region21
    $region20: #{tpu_custom_call.1} parent=1 // pred_region
      %48 = dma.done [#allocation6], 4096
    $region21: #{tpu_custom_call.1} parent=1 // pred_fallthru
      _
    // Predicated region
    $region22: #{tpu_custom_call.1} parent=1 // pred_check
      _
    $region23: #{tpu_custom_call.1} parent=1 // pred_check_branch
      %50 = sbr.rel (0) target = $region25
    $region24: #{tpu_custom_call.1} parent=1 // pred_region
      %51 = dma.done [#allocation6], 128
    $region25: #{tpu_custom_call.1} parent=1 // pred_fallthru
      _
    %v53 = vld [vmem:[#allocation2] sm:$0xff]
    %v54 = vld [vmem:[#allocation2 + $0x8] sm:$0xff]
    %v55 = vld [vmem:[#allocation5] sm:$0xf]
    %v56 = vld [vmem:[#allocation5 + $0x4] sm:$0xf]
    %v57 = vld [vmem:[#allocation5 + $0x8] sm:$0xf]
    %v58 = vld [vmem:[#allocation5 + $0xc] sm:$0xf]
    %v59 = vld [vmem:[#allocation5 + $0x10] sm:$0xf]
    %v60 = vld [vmem:[#allocation5 + $0x14] sm:$0xf]
    %v61 = vld [vmem:[#allocation5 + $0x18] sm:$0xf]
    %v62 = vld [vmem:[#allocation5 + $0x1c] sm:$0xf]
    %v63 = vld [vmem:[#allocation5 + $0x20] sm:$0xf]
    %v64 = vld [vmem:[#allocation5 + $0x24] sm:$0xf]
    %v65 = vld [vmem:[#allocation5 + $0x28] sm:$0xf]
    %v66 = vld [vmem:[#allocation5 + $0x2c] sm:$0xf]
    %v67 = vld [vmem:[#allocation5 + $0x30] sm:$0xf]
    %v68 = vld [vmem:[#allocation5 + $0x34] sm:$0xf]
    %v69 = vld [vmem:[#allocation5 + $0x38] sm:$0xf]
    %v70 = vld [vmem:[#allocation5 + $0x3c] sm:$0xf]
    %v71 = vld [vmem:[#allocation5 + $0x40] sm:$0xf]
    %v72 = vld [vmem:[#allocation5 + $0x44] sm:$0xf]
    %v73 = vld [vmem:[#allocation5 + $0x48] sm:$0xf]
    %v74 = vld [vmem:[#allocation5 + $0x4c] sm:$0xf]
    %v75 = vld [vmem:[#allocation5 + $0x50] sm:$0xf]
    %v76 = vld [vmem:[#allocation5 + $0x54] sm:$0xf]
    %v77 = vld [vmem:[#allocation5 + $0x58] sm:$0xf]
    %v78 = vld [vmem:[#allocation5 + $0x5c] sm:$0xf]
    %v79 = vld [vmem:[#allocation5 + $0x60] sm:$0xf]
    %v80 = vld [vmem:[#allocation5 + $0x64] sm:$0xf]
    %v81 = vld [vmem:[#allocation5 + $0x68] sm:$0xf]
    %v82 = vld [vmem:[#allocation5 + $0x6c] sm:$0xf]
    %v83 = vld [vmem:[#allocation5 + $0x70] sm:$0xf]
    %v84 = vld [vmem:[#allocation5 + $0x74] sm:$0xf]
    %v85 = vld [vmem:[#allocation5 + $0x78] sm:$0xf]
    %v86 = vld [vmem:[#allocation5 + $0x7c] sm:$0xf]
    %v87 = vpack.c.bf16 %v53, %v53
    %v88 = vpack.c.bf16 %v54, %v54
    %v121 = vunpack.c.l.b16 %v55
    %v122 = vunpack.c.l.b16 %v56
    %v123 = vunpack.c.l.b16 %v57
    %v124 = vunpack.c.l.b16 %v58
    %v125 = vunpack.c.l.b16 %v59
    %v126 = vunpack.c.l.b16 %v60
    %v127 = vunpack.c.l.b16 %v61
    %v128 = vunpack.c.l.b16 %v62
    %v129 = vunpack.c.l.b16 %v63
    %v130 = vunpack.c.l.b16 %v64
    %v131 = vunpack.c.l.b16 %v65
    %v132 = vunpack.c.l.b16 %v66
    %v133 = vunpack.c.l.b16 %v67
    %v134 = vunpack.c.l.b16 %v68
    %v135 = vunpack.c.l.b16 %v69
    %v136 = vunpack.c.l.b16 %v70
    %v137 = vunpack.c.l.b16 %v71
    %v138 = vunpack.c.l.b16 %v72
    %v139 = vunpack.c.l.b16 %v73
    %v140 = vunpack.c.l.b16 %v74
    %v141 = vunpack.c.l.b16 %v75
    %v142 = vunpack.c.l.b16 %v76
    %v143 = vunpack.c.l.b16 %v77
    %v144 = vunpack.c.l.b16 %v78
    %v145 = vunpack.c.l.b16 %v79
    %v146 = vunpack.c.l.b16 %v80
    %v147 = vunpack.c.l.b16 %v81
    %v148 = vunpack.c.l.b16 %v82
    %v149 = vunpack.c.l.b16 %v83
    %v150 = vunpack.c.l.b16 %v84
    %v151 = vunpack.c.l.b16 %v85
    %v152 = vunpack.c.l.b16 %v86
    %v153 = vpack.c.b16 %v122, %v121
    %v154 = vpack.c.b16 %v124, %v123
    %v155 = vpack.c.b16 %v126, %v125
    %v156 = vpack.c.b16 %v128, %v127
    %v157 = vpack.c.b16 %v130, %v129
    %v158 = vpack.c.b16 %v132, %v131
    %v159 = vpack.c.b16 %v134, %v133
    %v160 = vpack.c.b16 %v136, %v135
    %v161 = vpack.c.b16 %v138, %v137
    %v162 = vpack.c.b16 %v140, %v139
    %v163 = vpack.c.b16 %v142, %v141
    %v164 = vpack.c.b16 %v144, %v143
    %v165 = vpack.c.b16 %v146, %v145
    %v166 = vpack.c.b16 %v148, %v147
    %v167 = vpack.c.b16 %v150, %v149
    %v168 = vpack.c.b16 %v152, %v151
    %185 = vmatprep.subr.bf16.mxu0 0
    %186 = vmatpush1.bf16.msra.mxu0 %v160
    %187 = vmatprep.subr.bf16.mxu0 0
    %188 = vmatpush1.bf16.msra.mxu0 %v159
    %189 = vmatprep.subr.bf16.mxu0 0
    %190 = vmatpush1.bf16.msra.mxu0 %v158
    %191 = vmatprep.subr.bf16.mxu0 0
    %192 = vmatpush1.bf16.msra.mxu0 %v157
    %193 = vmatprep.subr.bf16.mxu0 0
    %194 = vmatpush1.bf16.msra.mxu0 %v156
    %195 = vmatprep.subr.bf16.mxu0 0
    %196 = vmatpush1.bf16.msra.mxu0 %v155
    %197 = vmatprep.subr.bf16.mxu0 0
    %198 = vmatpush1.bf16.msra.mxu0 %v154
    %199 = vmatprep.subr.bf16.mxu0 0
    %200 = vmatpush1.bf16.msra.mxu0 %v153
    %201 = vmatprep.subr.bf16.mxu0 0
    %202 = vmatpush2.bf16.msra.mxu0 %v168
    %203 = vmatprep.subr.bf16.mxu0 0
    %204 = vmatpush2.bf16.msra.mxu0 %v167
    %205 = vmatprep.subr.bf16.mxu0 0
    %206 = vmatpush2.bf16.msra.mxu0 %v166
    %207 = vmatprep.subr.bf16.mxu0 0
    %208 = vmatpush2.bf16.msra.mxu0 %v165
    %209 = vmatprep.subr.bf16.mxu0 0
    %210 = vmatpush2.bf16.msra.mxu0 %v164
    %211 = vmatprep.subr.bf16.mxu0 0
    %212 = vmatpush2.bf16.msra.mxu0 %v163
    %213 = vmatprep.subr.bf16.mxu0 0
    %214 = vmatpush2.bf16.msra.mxu0 %v162
    %215 = vmatprep.subr.bf16.mxu0 0
    %216 = vmatpush2.bf16.msra.mxu0 %v161
    %217 = vmatprep.mubr.bf16.mxu0 %v88
    %218 = vmatmul.mubr.bf16.gmra.mxu0 %v87
    %v219 = vpop.f32.mrf.mxu0
    %v220 = vadd.f32 0.0, %v219
    %v221 = vpop.f32.mrf.mxu0
    %v222 = vpop.f32.mrf.mxu0
    %v223 = vpop.f32.mrf.mxu0
    %224 = vdwg.mxu0
    %v225 = vrot.slane %v220, 4
    %v226 = vadd.f32 %v220, %v225
    %v227 = vrot.slane %v226, 2
    %v228 = vadd.f32 %v226, %v227
    %v229 = vrot.slane %v228, 1
    %v230 = vadd.f32 %v228, %v229
    %v231 = vrcp.pop 8.0
    %v232 = vmul.f32 %v230, %v231
    %v233 = vmul.f32 %v220, %v220
    %v234 = vrot.slane %v233, 4
    %v235 = vadd.f32 %v233, %v234
    %v236 = vrot.slane %v235, 2
    %v237 = vadd.f32 %v235, %v236
    %v238 = vrot.slane %v237, 1
    %v239 = vadd.f32 %v237, %v238
    %v240 = vmul.f32 %v239, %v231
    %v241 = vmul.f32 %v232, %v232
    %v242 = vsub.f32 %v240, %v241
    %v243 = vmax.f32 %v242, 0.0
    %v244 = vld [vmem:[#allocation7] sm:$0x1]
    %v245 = vadd.f32 %v243, 1e-05
    %v246 = vrsqrt.pop %v245
    %v247 = vmul.f32 %v244, %v246
    %v248 = vld [vmem:[#allocation7 + $0x1] sm:$0x1]
    %v249 = vmul.f32 %v232, %v247
    %v250 = vsub.f32 %v248, %v249
    %v251 = vlaneseq
    %v252 = vshrl.u32 %v251, 7
    %v253 = vsub.s32 0, %v252
    %v254 = vrot.slane %v247, %v253
    %v255 = vmul.f32 %v220, %v254
    %v256 = vlaneseq
    %v257 = vshrl.u32 %v256, 7
    %v258 = vsub.s32 0, %v257
    %v259 = vrot.slane %v250, %v258
    %v260 = vadd.f32 %v255, %v259
    %v261 = vmax.f32 %v260, 0.0
    %v262 = vld [vmem:[#allocation5 + $0x80] sm:$0xf]
    %v263 = vld [vmem:[#allocation5 + $0x84] sm:$0xf]
    %v264 = vld [vmem:[#allocation5 + $0x88] sm:$0xf]
    %v265 = vld [vmem:[#allocation5 + $0x8c] sm:$0xf]
    %v266 = vld [vmem:[#allocation5 + $0x90] sm:$0xf]
    %v267 = vld [vmem:[#allocation5 + $0x94] sm:$0xf]
    %v268 = vld [vmem:[#allocation5 + $0x98] sm:$0xf]
    %v269 = vld [vmem:[#allocation5 + $0x9c] sm:$0xf]
    %v270 = vld [vmem:[#allocation5 + $0xa0] sm:$0xf]
    %v271 = vld [vmem:[#allocation5 + $0xa4] sm:$0xf]
    %v272 = vld [vmem:[#allocation5 + $0xa8] sm:$0xf]
    %v273 = vld [vmem:[#allocation5 + $0xac] sm:$0xf]
    %v274 = vld [vmem:[#allocation5 + $0xb0] sm:$0xf]
    %v275 = vld [vmem:[#allocation5 + $0xb4] sm:$0xf]
    %v276 = vld [vmem:[#allocation5 + $0xb8] sm:$0xf]
    %v277 = vld [vmem:[#allocation5 + $0xbc] sm:$0xf]
    %v278 = vpack.c.bf16 %v261, %v261
    %v295 = vunpack.c.l.b16 %v262
    %v296 = vunpack.c.l.b16 %v263
    %v297 = vunpack.c.l.b16 %v264
    %v298 = vunpack.c.l.b16 %v265
    %v299 = vunpack.c.l.b16 %v266
    %v300 = vunpack.c.l.b16 %v267
    %v301 = vunpack.c.l.b16 %v268
    %v302 = vunpack.c.l.b16 %v269
    %v303 = vunpack.c.l.b16 %v270
    %v304 = vunpack.c.l.b16 %v271
    %v305 = vunpack.c.l.b16 %v272
    %v306 = vunpack.c.l.b16 %v273
    %v307 = vunpack.c.l.b16 %v274
    %v308 = vunpack.c.l.b16 %v275
    %v309 = vunpack.c.l.b16 %v276
    %v310 = vunpack.c.l.b16 %v277
    %v311 = vpack.c.b16 %v296, %v295
    %v312 = vpack.c.b16 %v298, %v297
    %v313 = vpack.c.b16 %v300, %v299
    %v314 = vpack.c.b16 %v302, %v301
    %v315 = vpack.c.b16 %v304, %v303
    %v316 = vpack.c.b16 %v306, %v305
    %v317 = vpack.c.b16 %v308, %v307
    %v318 = vpack.c.b16 %v310, %v309
    %327 = vmatprep.subr.bf16.mxu0 0
    %328 = vmatpush1.bf16.msra.mxu0 %v318
    %329 = vmatprep.subr.bf16.mxu0 0
    %330 = vmatpush1.bf16.msra.mxu0 %v317
    %331 = vmatprep.subr.bf16.mxu0 0
    %332 = vmatpush1.bf16.msra.mxu0 %v316
    %333 = vmatprep.subr.bf16.mxu0 0
    %334 = vmatpush1.bf16.msra.mxu0 %v315
    %335 = vmatprep.subr.bf16.mxu0 0
    %336 = vmatpush1.bf16.msra.mxu0 %v314
    %337 = vmatprep.subr.bf16.mxu0 0
    %338 = vmatpush1.bf16.msra.mxu0 %v313
    %339 = vmatprep.subr.bf16.mxu0 0
    %340 = vmatpush1.bf16.msra.mxu0 %v312
    %341 = vmatprep.subr.bf16.mxu0 0
    %342 = vmatpush1.bf16.msra.mxu0 %v311
    %343 = vmatprep.subr.bf16.mxu0 0
    %344 = vmatpush2.bf16.msra.mxu0 0
    %345 = vmatprep.subr.bf16.mxu0 0
    %346 = vmatpush2.bf16.msra.mxu0 0
    %347 = vmatprep.subr.bf16.mxu0 0
    %348 = vmatpush2.bf16.msra.mxu0 0
    %349 = vmatprep.subr.bf16.mxu0 0
    %350 = vmatpush2.bf16.msra.mxu0 0
    %351 = vmatprep.subr.bf16.mxu0 0
    %352 = vmatpush2.bf16.msra.mxu0 0
    %353 = vmatprep.subr.bf16.mxu0 0
    %354 = vmatpush2.bf16.msra.mxu0 0
    %355 = vmatprep.subr.bf16.mxu0 0
    %356 = vmatpush2.bf16.msra.mxu0 0
    %357 = vmatprep.subr.bf16.mxu0 0
    %358 = vmatpush2.bf16.msra.mxu0 0
    %359 = vmatprep.mubr.bf16.mxu0 0
    %360 = vmatmul.mubr.bf16.gmra.mxu0 %v278
    %v361 = vpop.f32.mrf.mxu0
    %v362 = vadd.f32 0.0, %v361
    %v363 = vpop.f32.mrf.mxu0
    %v364 = vpop.f32.mrf.mxu0
    %v365 = vpop.f32.mrf.mxu0
    %366 = vdwg.mxu0
    %v367 = vrot.slane %v362, 4
    %v368 = vadd.f32 %v362, %v367
    %v369 = vrot.slane %v368, 2
    %v370 = vadd.f32 %v368, %v369
    %v371 = vrot.slane %v370, 1
    %v372 = vadd.f32 %v370, %v371
    %v373 = vmul.f32 %v372, %v231
    %v374 = vmul.f32 %v362, %v362
    %v375 = vrot.slane %v374, 4
    %v376 = vadd.f32 %v374, %v375
    %v377 = vrot.slane %v376, 2
    %v378 = vadd.f32 %v376, %v377
    %v379 = vrot.slane %v378, 1
    %v380 = vadd.f32 %v378, %v379
    %v381 = vmul.f32 %v380, %v231
    %v382 = vmul.f32 %v373, %v373
    %v383 = vsub.f32 %v381, %v382
    %v384 = vmax.f32 %v383, 0.0
    %v385 = vld [vmem:[#allocation7 + $0x2] sm:$0x1]
    %v386 = vadd.f32 %v384, 1e-05
    %v387 = vrsqrt.pop %v386
    %v388 = vmul.f32 %v385, %v387
    %v389 = vld [vmem:[#allocation7 + $0x3] sm:$0x1]
    %v390 = vmul.f32 %v373, %v388
    %v391 = vsub.f32 %v389, %v390
    %v392 = vlaneseq
    %v393 = vshrl.u32 %v392, 7
    %v394 = vsub.s32 0, %v393
    %v395 = vrot.slane %v388, %v394
    %v396 = vmul.f32 %v362, %v395
    %v397 = vlaneseq
    %v398 = vshrl.u32 %v397, 7
    %v399 = vsub.s32 0, %v398
    %v400 = vrot.slane %v391, %v399
    %v401 = vadd.f32 %v396, %v400
    %v402 = vmax.f32 %v401, 0.0
    %v403 = vld [vmem:[#allocation5 + $0xc0] sm:$0xf]
    %v404 = vld [vmem:[#allocation5 + $0xc4] sm:$0xf]
    %v405 = vld [vmem:[#allocation5 + $0xc8] sm:$0xf]
    %v406 = vld [vmem:[#allocation5 + $0xcc] sm:$0xf]
    %v407 = vld [vmem:[#allocation5 + $0xd0] sm:$0xf]
    %v408 = vld [vmem:[#allocation5 + $0xd4] sm:$0xf]
    %v409 = vld [vmem:[#allocation5 + $0xd8] sm:$0xf]
    %v410 = vld [vmem:[#allocation5 + $0xdc] sm:$0xf]
    %v411 = vld [vmem:[#allocation5 + $0xe0] sm:$0xf]
    %v412 = vld [vmem:[#allocation5 + $0xe4] sm:$0xf]
    %v413 = vld [vmem:[#allocation5 + $0xe8] sm:$0xf]
    %v414 = vld [vmem:[#allocation5 + $0xec] sm:$0xf]
    %v415 = vld [vmem:[#allocation5 + $0xf0] sm:$0xf]
    %v416 = vld [vmem:[#allocation5 + $0xf4] sm:$0xf]
    %v417 = vld [vmem:[#allocation5 + $0xf8] sm:$0xf]
    %v418 = vld [vmem:[#allocation5 + $0xfc] sm:$0xf]
    %v419 = vpack.c.bf16 %v402, %v402
    %v436 = vunpack.c.l.b16 %v403
    %v437 = vunpack.c.l.b16 %v404
    %v438 = vunpack.c.l.b16 %v405
    %v439 = vunpack.c.l.b16 %v406
    %v440 = vunpack.c.l.b16 %v407
    %v441 = vunpack.c.l.b16 %v408
    %v442 = vunpack.c.l.b16 %v409
    %v443 = vunpack.c.l.b16 %v410
    %v444 = vunpack.c.l.b16 %v411
    %v445 = vunpack.c.l.b16 %v412
    %v446 = vunpack.c.l.b16 %v413
    %v447 = vunpack.c.l.b16 %v414
    %v448 = vunpack.c.l.b16 %v415
    %v449 = vunpack.c.l.b16 %v416
    %v450 = vunpack.c.l.b16 %v417
    %v451 = vunpack.c.l.b16 %v418
    %v452 = vpack.c.b16 %v437, %v436
    %v453 = vpack.c.b16 %v439, %v438
    %v454 = vpack.c.b16 %v441, %v440
    %v455 = vpack.c.b16 %v443, %v442
    %v456 = vpack.c.b16 %v445, %v444
    %v457 = vpack.c.b16 %v447, %v446
    %v458 = vpack.c.b16 %v449, %v448
    %v459 = vpack.c.b16 %v451, %v450
    %468 = vmatprep.subr.bf16.mxu0 0
    %469 = vmatpush1.bf16.msra.mxu0 %v459
    %470 = vmatprep.subr.bf16.mxu0 0
    %471 = vmatpush1.bf16.msra.mxu0 %v458
    %472 = vmatprep.subr.bf16.mxu0 0
    %473 = vmatpush1.bf16.msra.mxu0 %v457
    %474 = vmatprep.subr.bf16.mxu0 0
    %475 = vmatpush1.bf16.msra.mxu0 %v456
    %476 = vmatprep.subr.bf16.mxu0 0
    %477 = vmatpush1.bf16.msra.mxu0 %v455
    %478 = vmatprep.subr.bf16.mxu0 0
    %479 = vmatpush1.bf16.msra.mxu0 %v454
    %480 = vmatprep.subr.bf16.mxu0 0
    %481 = vmatpush1.bf16.msra.mxu0 %v453
    %482 = vmatprep.subr.bf16.mxu0 0
    %483 = vmatpush1.bf16.msra.mxu0 %v452
    %484 = vmatprep.subr.bf16.mxu0 0
    %485 = vmatpush2.bf16.msra.mxu0 0
    %486 = vmatprep.subr.bf16.mxu0 0
    %487 = vmatpush2.bf16.msra.mxu0 0
    %488 = vmatprep.subr.bf16.mxu0 0
    %489 = vmatpush2.bf16.msra.mxu0 0
    %490 = vmatprep.subr.bf16.mxu0 0
    %491 = vmatpush2.bf16.msra.mxu0 0
    %492 = vmatprep.subr.bf16.mxu0 0
    %493 = vmatpush2.bf16.msra.mxu0 0
    %494 = vmatprep.subr.bf16.mxu0 0
    %495 = vmatpush2.bf16.msra.mxu0 0
    %496 = vmatprep.subr.bf16.mxu0 0
    %497 = vmatpush2.bf16.msra.mxu0 0
    %498 = vmatprep.subr.bf16.mxu0 0
    %499 = vmatpush2.bf16.msra.mxu0 0
    %500 = vmatprep.mubr.bf16.mxu0 0
    %501 = vmatmul.mubr.bf16.gmra.mxu0 %v419
    %v502 = vpop.f32.mrf.mxu0
    %v503 = vadd.f32 0.0, %v502
    %v504 = vpop.f32.mrf.mxu0
    %v505 = vpop.f32.mrf.mxu0
    %v506 = vpop.f32.mrf.mxu0
    %507 = vdwg.mxu0
    %v508 = vrot.slane %v503, 4
    %v509 = vadd.f32 %v503, %v508
    %v510 = vrot.slane %v509, 2
    %v511 = vadd.f32 %v509, %v510
    %v512 = vrot.slane %v511, 1
    %v513 = vadd.f32 %v511, %v512
    %v514 = vmul.f32 %v513, %v231
    %v515 = vmul.f32 %v503, %v503
    %v516 = vrot.slane %v515, 4
    %v517 = vadd.f32 %v515, %v516
    %v518 = vrot.slane %v517, 2
    %v519 = vadd.f32 %v517, %v518
    %v520 = vrot.slane %v519, 1
    %v521 = vadd.f32 %v519, %v520
    %v522 = vmul.f32 %v521, %v231
    %v523 = vmul.f32 %v514, %v514
    %v524 = vsub.f32 %v522, %v523
    %v525 = vmax.f32 %v524, 0.0
    %v526 = vld [vmem:[#allocation7 + $0x4] sm:$0x1]
    %v527 = vadd.f32 %v525, 1e-05
    %v528 = vrsqrt.pop %v527
    %v529 = vmul.f32 %v526, %v528
    %v530 = vld [vmem:[#allocation7 + $0x5] sm:$0x1]
    %v531 = vmul.f32 %v514, %v529
    %v532 = vsub.f32 %v530, %v531
    %v533 = vlaneseq
    %v534 = vshrl.u32 %v533, 7
    %v535 = vsub.s32 0, %v534
    %v536 = vrot.slane %v529, %v535
    %v537 = vmul.f32 %v503, %v536
    %v538 = vlaneseq
    %v539 = vshrl.u32 %v538, 7
    %v540 = vsub.s32 0, %v539
    %v541 = vrot.slane %v532, %v540
    %v542 = vadd.f32 %v537, %v541
    %v543 = vmax.f32 %v542, 0.0
    %v544 = vlaneseq
    %v545 = vand.u32 %v544, 127
    %vm546 = vcmp.lt.s32.totalorder %v545, 10
    %v547 = vsel %vm546, %v543, -1e+30
    %548 = vmax.xlane.f32.xlu0 %v547
    %v549 = vpop.xlane.xlu0 %548
    %v550 = vsub.f32 %v547, %v549
    %v551 = vmul.f32 %v550, 1.442695
    %v552 = vpow.pop %v551
    %553 = vadd.xlane.f32.xlu0 %v552
    %v554 = vpop.xlane.xlu0 %553
    %v555 = vlog2.pop %v554
    %v556 = vmul.f32 %v555, 0.6931472
    %v557 = vsub.f32 %v550, %v556
    %558 = vst [vmem:[#allocation8] sm:$0xff] %v557
    // Predicated region
    $region26: #{tpu_custom_call.1} parent=1 // pred_check
      _
    $region27: #{tpu_custom_call.1} parent=1 // pred_check_branch
      %560 = sbr.rel (0) target = $region29
    $region28: #{tpu_custom_call.1} parent=1 // pred_region
      %s562 = ssub.s32 128, 128
      %563 = vsyncadd [#allocation4], %s562
      %s565 = sshll.u32 [#allocation8], 4
      %s566 = int_to_ptr.vmem [resolvable:$true] %s565
      %568 = dma.vmem_to_hbm [thread:$0]  %s566, 128, %s3, [#allocation4]
    $region29: #{tpu_custom_call.1} parent=1 // pred_fallthru
      _
    // Predicated region
    $region30: #{tpu_custom_call.1} parent=1 // pred_check
      _
    $region31: #{tpu_custom_call.1} parent=1 // pred_check_branch
      %570 = sbr.rel (0) target = $region33
    $region32: #{tpu_custom_call.1} parent=1 // pred_region
      %571 = dma.done [#allocation4], 128
    $region33: #{tpu_custom_call.1} parent=1 // pred_fallthru
      _
    %572 = vsyncpa [#allocation3], 1
    %573 = vsyncpa [#allocation6], 1
    %574 = vsyncpa [#allocation4], 1

</llo_original>
